<compile_context>
chip_gen: v7x
topology: tpu7x:2x2x1
jax: 0.10.0
libtpu: 0.0.40
codegen_flags: <defaults>
</compile_context>

<pallas_src>
import functools

import jax
import jax.numpy as jnp
from jax.experimental import pallas as pl
from jax.experimental.pallas import tpu as pltpu

MARGIN = 1.0
WEIGHT_SIM = 1.0
WEIGHT_DISSIM = 1.0
_PAIRWISE_EPS = 1e-6  # matches torch.nn.functional.pairwise_distance default eps

_DEFAULT_BLOCK_BYTES = 4 * 1024 * 1024  # ~4 MiB per input block (>=85% HBM roofline)


def _contrastive_loss_kernel(x1_ref, x2_ref, lbl_ref, out_ref, *,
                             tile_b, batch, has_tail):
    i = pl.program_id(0)

    # Resident accumulator: output block index is constant, so the (1,1) output
    # lives in VMEM across the whole grid and is written back to HBM once.
    @pl.when(i == 0)
    def _init():
        out_ref[...] = jnp.zeros_like(out_ref)

    # Cast to f32 in-kernel (free vs DMA; required on v5e's f32-only VPU).
    x1 = x1_ref[...].astype(jnp.float32)
    x2 = x2_ref[...].astype(jnp.float32)

    diff = x1 - x2 + _PAIRWISE_EPS                            # (tile_b, D)
    dist2 = jnp.sum(diff * diff, axis=-1, keepdims=True)      # (tile_b, 1)
    dist = jnp.sqrt(dist2)                                    # (tile_b, 1)  (EUP)

    lbl = lbl_ref[...].astype(jnp.float32)                    # (tile_b, 1)
    loss_sim = WEIGHT_SIM * lbl * dist2                       # dist^2 directly
    hinge = jnp.maximum(MARGIN - dist, 0.0)
    loss_dissim = WEIGHT_DISSIM * (1.0 - lbl) * (hinge * hinge)
    per_row = loss_sim + loss_dissim                          # (tile_b, 1)

    if has_tail:
        # Only the last (partial) tile pays for the iota/compare/where.
        last = pl.num_programs(0) - 1

        @pl.when(i == last)
        def _tail():
            row = i * tile_b + jax.lax.broadcasted_iota(jnp.int32, (tile_b, 1), 0)
            masked = jnp.where(row < batch, per_row, 0.0)
            out_ref[...] += jnp.sum(masked).reshape(1, 1)

        @pl.when(i != last)
        def _body():
            out_ref[...] += jnp.sum(per_row).reshape(1, 1)
    else:
        out_ref[...] += jnp.sum(per_row).reshape(1, 1)


def _sublane_multiple(dtype):
    # Packed sublane tile: f32 -> 8, bf16 -> 16, int8/fp8 -> 32.
    return max(8, 32 // jnp.dtype(dtype).itemsize)


def _pick_tile_b(B, D, dtype, target_block_bytes):
    """Byte-driven batch tile (no hard row cap), rounded to the sublane tile."""
    itemsize = jnp.dtype(dtype).itemsize
    row_bytes = max(D * itemsize, 1)
    rows = max(1, target_block_bytes // row_bytes)
    sub = _sublane_multiple(dtype)
    rows = max(sub, (rows // sub) * sub)
    if rows >= B:
        return B  # whole-batch block (full dim is always layout-legal)
    return int(rows)


def contrastive_loss(output1, output2, label, *,
                     target_block_bytes=_DEFAULT_BLOCK_BYTES):
    """Pallas TPU ContrastiveLoss.forward.

    output1, output2: (B, D) float32/bfloat16 features
    label:            (B,)   0/1 labels
    returns scalar float32 loss (mean over batch).
    """
    B, D = output1.shape
    itemsize = jnp.dtype(output1.dtype).itemsize
    label2d = label.reshape(B, 1).astype(jnp.float32)

    tile_b = _pick_tile_b(B, D, output1.dtype, target_block_bytes)
    num_tiles = pl.cdiv(B, tile_b)
    has_tail = (B % tile_b) != 0

    kernel = functools.partial(_contrastive_loss_kernel,
                               tile_b=tile_b, batch=B, has_tail=has_tail)

    # 2 feature inputs x 2 pipeline buffers + label buffers + output + slack.
    block_bytes = tile_b * D * itemsize
    vmem_needed = 2 * 2 * block_bytes + 2 * (tile_b * 4) + (1 << 16)
    # Cap at 40 MiB so the footprint stays inside v7x's 64 MiB per-TC VMEM.
    vmem_limit = int(min(40 * 1024 * 1024,
                         max(16 * 1024 * 1024, (vmem_needed * 5) // 4)))

    total = pl.pallas_call(
        kernel,
        out_shape=jax.ShapeDtypeStruct((1, 1), jnp.float32),
        grid=(num_tiles,),
        in_specs=[
            pl.BlockSpec((tile_b, D), lambda i: (i, 0)),
            pl.BlockSpec((tile_b, D), lambda i: (i, 0)),
            pl.BlockSpec((tile_b, 1), lambda i: (i, 0)),
        ],
        out_specs=pl.BlockSpec((1, 1), lambda i: (0, 0)),
        compiler_params=pltpu.CompilerParams(
            # Grid axis reduces into the resident accumulator -> "arbitrary".
            # TODO(synk): on v7x, switch back to per-tile partial sums and use
            # pltpu.CORE_PARALLEL so both TensorCores stream HBM concurrently.
            dimension_semantics=("arbitrary",),
            vmem_limit_bytes=vmem_limit,
        ),
        # Advisory: mark this as a memory-bound custom call for XLA scheduling.
        cost_estimate=pl.CostEstimate(
            flops=3 * B * D + 8 * B,
            transcendentals=B,
            bytes_accessed=2 * B * D * itemsize + 4 * B + 4,
        ),
    )(output1, output2, label2d)

    return total[0, 0] / B


def contrastive_loss_ref(output1, output2, label):
    # Plain-JAX reference mirroring the PyTorch module semantics.
    diff = output1.astype(jnp.float32) - output2.astype(jnp.float32) + _PAIRWISE_EPS
    dist = jnp.sqrt(jnp.sum(diff * diff, axis=-1))
    loss_sim = WEIGHT_SIM * label * dist ** 2
    loss_dissim = WEIGHT_DISSIM * (1.0 - label) * jnp.maximum(MARGIN - dist, 0.0) ** 2
    return jnp.mean(loss_sim + loss_dissim)


if __name__ == "__main__":
    key = jax.random.PRNGKey(0)
    k1, k2, k3, k4, k5, k6 = jax.random.split(key, 6)

    # Case 1: small, single whole-batch tile.
    B, D = 8, 32
    o1 = jax.random.normal(k1, (B, D), dtype=jnp.float32)
    o2 = jax.random.normal(k2, (B, D), dtype=jnp.float32)
    lbl = jax.random.bernoulli(k3, 0.5, (B,)).astype(jnp.float32)
    loss = contrastive_loss(o1, o2, lbl)
    jax.block_until_ready(loss)
    ref = contrastive_loss_ref(o1, o2, lbl)
    assert jnp.allclose(loss, ref, rtol=1e-5, atol=1e-5), (loss, ref)

    # Case 2: force multi-tile + tail masking (B % tile_b != 0) via a small
    # block-byte target (default target would pick a single whole-batch tile).
    B2, D2 = 520, 128
    o1b = jax.random.normal(k4, (B2, D2), dtype=jnp.float32)
    o2b = jax.random.normal(k5, (B2, D2), dtype=jnp.float32)
    lblb = jax.random.bernoulli(k6, 0.5, (B2,)).astype(jnp.float32)
    loss_b = contrastive_loss(o1b, o2b, lblb, target_block_bytes=64 * 1024)
    jax.block_until_ready(loss_b)
    ref_b = contrastive_loss_ref(o1b, o2b, lblb)
    assert jnp.allclose(loss_b, ref_b, rtol=1e-5, atol=1e-5), (loss_b, ref_b)

    # Case 3: bf16 inputs exercise the dtype-aware sublane rounding (tile of 16).
    o1c = o1b.astype(jnp.bfloat16)
    o2c = o2b.astype(jnp.bfloat16)
    loss_c = contrastive_loss(o1c, o2c, lblb, target_block_bytes=64 * 1024)
    jax.block_until_ready(loss_c)
    ref_c = contrastive_loss_ref(o1c, o2c, lblb)
    assert jnp.allclose(loss_c, ref_c, rtol=1e-4, atol=1e-4), (loss_c, ref_c)

    print("KERNEL_OK")
</pallas_src>

<mosaic_0001>
module attributes {stable_mosaic.version = 11 : i64} {
  func.func @_contrastive_loss_kernel(%arg0: i32, %arg1: memref<8x32xf32, #tpu.memory_space<vmem>>, %arg2: memref<8x32xf32, #tpu.memory_space<vmem>>, %arg3: memref<8x1xf32, #tpu.memory_space<vmem>>, %arg4: memref<1x1xf32, #tpu.memory_space<vmem>>) attributes {dimension_semantics = [#tpu.dimension_semantics<arbitrary>], iteration_bounds = array<i64: 1>, scalar_prefetch = 0 : i64, scratch_operands = 0 : i64, tpu.core_type = #tpu.core_type<tc>, window_params = [{transform_indices = @transform_0, window_bounds = array<i64: 8, 32>}, {transform_indices = @transform_1, window_bounds = array<i64: 8, 32>}, {transform_indices = @transform_2, window_bounds = array<i64: 8, 1>}, {pipeline_mode = #tpu.pipeline_mode<synchronous>, transform_indices = @transform_3, window_bounds = array<i64: 1, 1>}]} {
    %c0_i32 = arith.constant 0 : i32
    %0 = arith.cmpi eq, %arg0, %c0_i32 : i32
    %1 = arith.extui %0 : i1 to i32
    %c0_i32_0 = arith.constant 0 : i32
    %2 = arith.cmpi ne, %1, %c0_i32_0 : i32
    scf.if %2 {
      %cst_17 = arith.constant 0.000000e+00 : f32
      %35 = vector.broadcast %cst_17 : f32 to vector<1x1xf32>
      %c0_18 = arith.constant 0 : index
      %c0_19 = arith.constant 0 : index
      %36 = vector.load %arg4[%c0_18, %c0_19] : memref<1x1xf32, #tpu.memory_space<vmem>>, vector<1x1xf32>
      tpu.vector_store %arg4[%c0_18, %c0_19], %35 {strides = array<i32>} : memref<1x1xf32, #tpu.memory_space<vmem>>, vector<1x1xf32>,
    } else {
    }
    %c0 = arith.constant 0 : index
    %c0_1 = arith.constant 0 : index
    %3 = vector.load %arg1[%c0, %c0_1] : memref<8x32xf32, #tpu.memory_space<vmem>>, vector<8x32xf32>
    %c0_2 = arith.constant 0 : index
    %c0_3 = arith.constant 0 : index
    %4 = vector.load %arg2[%c0_2, %c0_3] : memref<8x32xf32, #tpu.memory_space<vmem>>, vector<8x32xf32>
    %5 = arith.subf %3, %4 : vector<8x32xf32>
    %cst = arith.constant 9.99999997E-7 : f32
    %6 = vector.broadcast %cst : f32 to vector<8x32xf32>
    %7 = arith.addf %5, %6 : vector<8x32xf32>
    %8 = arith.mulf %7, %7 : vector<8x32xf32>
    %cst_4 = arith.constant dense<0.000000e+00> : vector<8xf32>
    %9 = vector.multi_reduction <add>, %8, %cst_4 [1] : vector<8x32xf32> to vector<8xf32>
    %10 = vector.shape_cast %9 : vector<8xf32> to vector<8x1xf32>
    %11 = math.sqrt %10 : vector<8x1xf32>
    %c0_5 = arith.constant 0 : index
    %c0_6 = arith.constant 0 : index
    %12 = vector.load %arg3[%c0_5, %c0_6] : memref<8x1xf32, #tpu.memory_space<vmem>>, vector<8x1xf32>
    %cst_7 = arith.constant 1.000000e+00 : f32
    %13 = vector.broadcast %cst_7 : f32 to vector<8x1xf32>
    %14 = arith.mulf %13, %12 : vector<8x1xf32>
    %15 = arith.mulf %14, %10 : vector<8x1xf32>
    %cst_8 = arith.constant 1.000000e+00 : f32
    %16 = vector.broadcast %cst_8 : f32 to vector<8x1xf32>
    %17 = arith.subf %16, %11 : vector<8x1xf32>
    %cst_9 = arith.constant 0.000000e+00 : f32
    %18 = vector.broadcast %cst_9 : f32 to vector<8x1xf32>
    %19 = arith.maximumf %17, %18 : vector<8x1xf32>
    %cst_10 = arith.constant 1.000000e+00 : f32
    %20 = vector.broadcast %cst_10 : f32 to vector<8x1xf32>
    %21 = arith.subf %20, %12 : vector<8x1xf32>
    %cst_11 = arith.constant 1.000000e+00 : f32
    %22 = vector.broadcast %cst_11 : f32 to vector<8x1xf32>
    %23 = arith.mulf %22, %21 : vector<8x1xf32>
    %24 = arith.mulf %19, %19 : vector<8x1xf32>
    %25 = arith.mulf %23, %24 : vector<8x1xf32>
    %26 = arith.addf %15, %25 : vector<8x1xf32>
    %c0_12 = arith.constant 0 : index
    %c0_13 = arith.constant 0 : index
    %27 = vector.load %arg4[%c0_12, %c0_13] : memref<1x1xf32, #tpu.memory_space<vmem>>, vector<1x1xf32>
    %28 = vector.shape_cast %26 : vector<8x1xf32> to vector<1x8x1xf32>
    %cst_14 = arith.constant dense<0.000000e+00> : vector<1xf32>
    %29 = vector.multi_reduction <add>, %28, %cst_14 [1, 2] : vector<1x8x1xf32> to vector<1xf32>
    %30 = vector.shape_cast %29 : vector<1xf32> to vector<1x1x1xf32>
    %31 = vector.extract %30[0, 0, 0] : f32 from vector<1x1x1xf32>
    %32 = vector.broadcast %31 : f32 to vector<1x1xf32>
    %33 = arith.addf %27, %32 : vector<1x1xf32>
    %c0_15 = arith.constant 0 : index
    %c0_16 = arith.constant 0 : index
    %34 = vector.load %arg4[%c0_15, %c0_16] : memref<1x1xf32, #tpu.memory_space<vmem>>, vector<1x1xf32>
    tpu.vector_store %arg4[%c0_15, %c0_16], %33 {strides = array<i32>} : memref<1x1xf32, #tpu.memory_space<vmem>>, vector<1x1xf32>,
    return
  }
  func.func @transform_0(%arg0: i32) -> (i32, i32) {
    %c0_i32 = arith.constant 0 : i32
    %c0_i32_0 = arith.constant 0 : i32
    return %arg0, %c0_i32 : i32, i32
  }
  func.func @transform_1(%arg0: i32) -> (i32, i32) {
    %c0_i32 = arith.constant 0 : i32
    %c0_i32_0 = arith.constant 0 : i32
    return %arg0, %c0_i32 : i32, i32
  }
  func.func @transform_2(%arg0: i32) -> (i32, i32) {
    %c0_i32 = arith.constant 0 : i32
    %c0_i32_0 = arith.constant 0 : i32
    return %arg0, %c0_i32 : i32, i32
  }
  func.func @transform_3(%arg0: i32) -> (i32, i32) {
    %c0_i32 = arith.constant 0 : i32
    %c0_i32_0 = arith.constant 0 : i32
    %c0_i32_1 = arith.constant 0 : i32
    return %c0_i32, %c0_i32_0 : i32, i32
  }
}

</mosaic_0001>

<llo_original>
// kernel: tpu_custom_call.1
$region0: #{tpu_custom_call.1}
  #allocation0 [shape = 'u32[]', space=smem, size = 0x4, offset = 0x4, fixed_abs, tag = 'smem constant byte address 0x4 - core index']
  #allocation1 [shape = 'u32[144,128]{1,0:T(1,128)}', space=vmem, size = 0x12000, scoped, tag = 'internal scratch']
  %s0 = inlined_call_operand.vmem [shape: f32[8,32], index: 0, kind: input, shape index: {}]
  %s1 = inlined_call_operand.hbm [shape: f32[8,32], index: 1, kind: input, shape index: {}]
  %s2 = inlined_call_operand.vmem [shape: f32[8,1], index: 2, kind: input, shape index: {}]
  %s3 = inlined_call_operand.hbm [shape: f32[1,1], index: 3, kind: output, shape index: {}]
  %s4 = sld [smem:[#allocation0]]
  $region30: #{tpu_custom_call.1} parent=0
    _
  %s6 = ssub.s32 1, %s4
  %s7 = scalar_select 0, %s6, %s4
  $region1: #{tpu_custom_call.1} parent=0
    #allocation2 [shape = 'u8[4096]{0}', space=vmem, size = 0x1000, scoped, tag = 'input window, operand 1, single buffered']
    #allocation3 [shape = 's32[1]{0}', space=sflag, size = 0x4, scoped, tag = 'scoped memory for tpu_custom_call.1']
    #allocation4 [shape = 's32[1]{0}', space=sflag, size = 0x4, scoped, tag = 'scoped memory for tpu_custom_call.1']
    #allocation5 [shape = 'u8[512]{0}', space=vmem, size = 0x400, scoped, tag = 'output window, operand 0, single buffered']
    %8 = vsyncpa [#allocation3], 0
    %9 = vsyncpa [#allocation4], 0
    // Predicated region
    $region2: #{tpu_custom_call.1} parent=1 // pred_check
      _
    $region3: #{tpu_custom_call.1} parent=1 // pred_check_branch
      %11 = sbr.rel (0) target = $region5
    $region4: #{tpu_custom_call.1} parent=1 // pred_region
      _
    $region5: #{tpu_custom_call.1} parent=1 // pred_fallthru
      _
    // Predicated region
    $region6: #{tpu_custom_call.1} parent=1 // pred_check
      _
    $region7: #{tpu_custom_call.1} parent=1 // pred_check_branch
      %13 = sbr.rel (0) target = $region9
    $region8: #{tpu_custom_call.1} parent=1 // pred_region
      %s15 = ssub.s32 128, 128
      %16 = vsyncadd [#allocation3], %s15
      %s18 = sshll.u32 [#allocation2], 4
      %s19 = int_to_ptr.vmem [resolvable:$true] %s18
      %21 = dma.hbm_to_vmem [thread:$0]  %s1, 128, %s19, [#allocation3]
    $region9: #{tpu_custom_call.1} parent=1 // pred_fallthru
      _
    // Predicated region
    $region10: #{tpu_custom_call.1} parent=1 // pred_check
      _
    $region11: #{tpu_custom_call.1} parent=1 // pred_check_branch
      %23 = sbr.rel (0) target = $region13
    $region12: #{tpu_custom_call.1} parent=1 // pred_region
      _
    $region13: #{tpu_custom_call.1} parent=1 // pred_fallthru
      _
    // Predicated region
    $region14: #{tpu_custom_call.1} parent=1 // pred_check
      _
    $region15: #{tpu_custom_call.1} parent=1 // pred_check_branch
      %25 = sbr.rel (0) target = $region17
    $region16: #{tpu_custom_call.1} parent=1 // pred_region
      %26 = dma.done [#allocation3], 128
    $region17: #{tpu_custom_call.1} parent=1 // pred_fallthru
      _
    %p27 = scmp.eq.s32.totalorder 0, 0
    // Predicated region
    $region18: #{tpu_custom_call.1} parent=1 // pred_check
      %p28 = pneg %p27
    $region19: #{tpu_custom_call.1} parent=1 // pred_check_branch
      %30 = sbr.rel (%p28) target = $region21
    $region20: #{tpu_custom_call.1} parent=1 // pred_region
      %vm31 = vcmask 0
      %32 = vst.msk [vmem:[#allocation5] sm:$0x1] %vm31, 0.0
    $region21: #{tpu_custom_call.1} parent=1 // pred_fallthru
      _
    %v33 = vld [vmem:[%s0] sm:$0xff]
    %v34 = vld [vmem:[#allocation2] sm:$0xff]
    %v35 = vsub.f32 %v33, %v34
    %v36 = vadd.f32 %v35, 1e-06
    %v37 = vmul.f32 %v36, %v36
    %vm38 = vcmask 261120
    %v39 = vsel %vm38, %v37, 0.0
    %40 = vadd.xlane.f32.xlu0 %v39
    %v41 = vpop.xlane.xlu0 %40
    %v42 = vrsqrt.pop %v41
    %v43 = vmul.f32 %v41, %v42
    %vm44 = vcmp.eq.f32.partialorder %v41, inf
    %v45 = vsel %vm44, %v41, %v43
    %vm46 = vcmp.eq.f32.partialorder %v41, 0.0
    %v47 = vand.u32 %v41, 2147483648
    %v48 = vsel %vm46, %v47, %v45
    %v49 = vld [vmem:[%s2] sm:$0xff]
    %v50 = vmul.f32 %v49, %v41
    %v51 = vsub.f32 1.0, %v48
    %v52 = vmax.f32 %v51, 0.0
    %v53 = vsub.f32 1.0, %v49
    %v54 = vmul.f32 %v52, %v52
    %v55 = vmul.f32 %v53, %v54
    %v56 = vadd.f32 %v50, %v55
    %v57 = vld [vmem:[#allocation5] sm:$0x1]
    %vm58 = vcmask 7168
    %v59 = vsel %vm58, %v56, 0.0
    %60 = vadd.xlane.f32.xlu0 %v59
    %v61 = vpop.xlane.xlu0 %60
    %v62 = vrot.slane %v61, 4
    %v63 = vadd.f32 %v61, %v62
    %v64 = vrot.slane %v63, 2
    %v65 = vadd.f32 %v63, %v64
    %v66 = vrot.slane %v65, 1
    %v67 = vadd.f32 %v65, %v66
    %s68 = vtos %v67
    %v69 = vstv %s68
    %v70 = vadd.f32 %v57, %v69
    %vm71 = vcmask 0
    %72 = vst.msk [vmem:[#allocation5] sm:$0x1] %vm71, %v70
    // Predicated region
    $region22: #{tpu_custom_call.1} parent=1 // pred_check
      _
    $region23: #{tpu_custom_call.1} parent=1 // pred_check_branch
      %74 = sbr.rel (0) target = $region25
    $region24: #{tpu_custom_call.1} parent=1 // pred_region
      %s76 = ssub.s32 16, 16
      %77 = vsyncadd [#allocation4], %s76
      %s79 = sshll.u32 [#allocation5], 4
      %s80 = int_to_ptr.vmem [resolvable:$true] %s79
      %82 = dma.vmem_to_hbm [thread:$0]  %s80, 16, %s3, [#allocation4]
    $region25: #{tpu_custom_call.1} parent=1 // pred_fallthru
      _
    // Predicated region
    $region26: #{tpu_custom_call.1} parent=1 // pred_check
      _
    $region27: #{tpu_custom_call.1} parent=1 // pred_check_branch
      %84 = sbr.rel (0) target = $region29
    $region28: #{tpu_custom_call.1} parent=1 // pred_region
      %85 = dma.done [#allocation4], 16
    $region29: #{tpu_custom_call.1} parent=1 // pred_fallthru
      _
    %86 = vsyncpa [#allocation3], 1
    %87 = vsyncpa [#allocation4], 1

</llo_original>
